<compile_context>
chip_gen: v5e
topology: v5e:2x2
jax: 0.10.0
libtpu: 0.0.40
codegen_flags: <defaults>
</compile_context>

<pallas_src>
import functools

import jax
import jax.numpy as jnp
from jax.experimental import pallas as pl
from jax.experimental.pallas import tpu as pltpu


def _round_up(x, m):
    return ((x + m - 1) // m) * m


def _cdiv(a, b):
    return -(-a // b)


def _num_tensorcores():
    """Parallel grid width: 2 on dual-TensorCore chips (v4/v5p/v7x), else 1."""
    try:
        kind = jax.devices()[0].device_kind.lower()
    except Exception:
        return 1
    return 2 if any(tag in kind for tag in ("v4", "v5p", "v7")) else 1


def _dqn_mlp_kernel(x_ref, w1_ref, b1_ref, w2_ref, b2_ref, w3_ref, b3_ref, o_ref):
    cdt = w1_ref.dtype  # compute dtype (bf16), set once by prepare_params
    # fc1 + bias + ReLU: cast x in-kernel (no wrapper pad/cast), f32 accumulation.
    x = x_ref[...].astype(cdt)
    h1 = jnp.dot(x, w1_ref[...], preferred_element_type=jnp.float32)
    h1 = jnp.maximum(h1 + b1_ref[...], 0.0).astype(cdt)
    # fc2 + bias + ReLU
    h2 = jnp.dot(h1, w2_ref[...], preferred_element_type=jnp.float32)
    h2 = jnp.maximum(h2 + b2_ref[...], 0.0).astype(cdt)
    # fc3 (no activation) -- narrow (tm, out_dim) store.
    o_ref[...] = (jnp.dot(h2, w3_ref[...], preferred_element_type=jnp.float32)
                  + b3_ref[...]).astype(o_ref.dtype)


def prepare_params(params, compute_dtype=jnp.bfloat16):
    """One-time cast/reshape of parameters to the kernel layout & dtypes.

    Call once (at init / after each target-network sync), NOT per forward call.
    Weights stored as (in_features, out_features); biases as (1, out_features) f32.
    """
    return {
        "w1": jnp.asarray(params["w1"], compute_dtype),
        "b1": jnp.asarray(params["b1"], jnp.float32).reshape(1, -1),
        "w2": jnp.asarray(params["w2"], compute_dtype),
        "b2": jnp.asarray(params["b2"], jnp.float32).reshape(1, -1),
        "w3": jnp.asarray(params["w3"], compute_dtype),
        "b3": jnp.asarray(params["b3"], jnp.float32).reshape(1, -1),
    }


@functools.partial(jax.jit, static_argnames=("max_tm",))
def dqn_forward(x, prepared, *, max_tm=1024):
    """Full DQN MLP forward in a single fused Pallas kernel call.

    x: (B, input_dim) float32
    prepared: output of prepare_params() (bf16 weights, f32 biases).
    """
    w1, b1 = prepared["w1"], prepared["b1"]
    w2, b2 = prepared["w2"], prepared["b2"]
    w3, b3 = prepared["w3"], prepared["b3"]

    B, in_dim = x.shape
    hid = w1.shape[1]
    out_dim = w3.shape[1]

    # hid-sized blocks are tiled (not full-extent) along the lane axis of several
    # operands, so hidden_dim must obey the (8,128) layout rule.
    assert hid % 128 == 0, f"hidden_dim must be a multiple of 128, got {hid}"
    assert w1.shape[0] == in_dim and w2.shape == (hid, hid) and w3.shape[0] == hid

    # Generation-aware batch tile: one grid step per TensorCore (grid=(1,) on
    # single-TC v5e/v6e, even grid >= 2 on dual-TC chips), capped for huge batches.
    num_cores = _num_tensorcores()
    tm = min(max_tm, _round_up(_cdiv(B, num_cores), 8))
    b_pad = _round_up(B, tm * num_cores)

    # Only pads when B is not already a multiple of the tile layout (demo: no-op).
    xp = x if b_pad == B else jnp.zeros((b_pad, in_dim), x.dtype).at[:B].set(x)

    grid = (b_pad // tm,)
    resident = lambda i: (0, 0)  # constant block index -> DMA'd once, VMEM-resident

    out = pl.pallas_call(
        _dqn_mlp_kernel,
        out_shape=jax.ShapeDtypeStruct((b_pad, out_dim), jnp.float32),
        grid=grid,
        in_specs=[
            pl.BlockSpec((tm, in_dim), lambda i: (i, 0)),   # x tile marches over batch
            pl.BlockSpec((in_dim, hid), resident),          # w1 (unpadded, full-extent K)
            pl.BlockSpec((1, hid), resident),               # b1
            pl.BlockSpec((hid, hid), resident),             # w2
            pl.BlockSpec((1, hid), resident),               # b2
            pl.BlockSpec((hid, out_dim), resident),         # w3 (unpadded N)
            pl.BlockSpec((1, out_dim), resident),           # b3 (unpadded N)
        ],
        out_specs=pl.BlockSpec((tm, out_dim), lambda i: (i, 0)),
        compiler_params=pltpu.CompilerParams(
            dimension_semantics=("parallel",)),             # shard batch across TCs
    )(xp, w1, b1, w2, b2, w3, b3)

    return out if b_pad == B else out[:B]


def xavier_uniform(key, fan_in, fan_out, dtype=jnp.float32):
    # Matches torch.nn.init.xavier_uniform_ (gain=1): U(-a, a), a = sqrt(6/(fan_in+fan_out))
    limit = float(jnp.sqrt(6.0 / (fan_in + fan_out)))
    # Sampled directly in (in_features, out_features) layout (transpose of torch weight).
    return jax.random.uniform(key, (fan_in, fan_out), dtype, minval=-limit, maxval=limit)


def init_params(key, input_dim, output_dim, hidden_dim=128):
    k1, k2, k3, kb1, kb2, kb3 = jax.random.split(key, 6)

    # PyTorch nn.Linear biases default-init U(-1/sqrt(fan_in), 1/sqrt(fan_in)).
    def bias(k, fan_in, n):
        bound = 1.0 / float(jnp.sqrt(fan_in))
        return jax.random.uniform(k, (1, n), jnp.float32, minval=-bound, maxval=bound)

    return {
        "w1": xavier_uniform(k1, input_dim, hidden_dim),
        "b1": bias(kb1, input_dim, hidden_dim),
        "w2": xavier_uniform(k2, hidden_dim, hidden_dim),
        "b2": bias(kb2, hidden_dim, hidden_dim),
        "w3": xavier_uniform(k3, hidden_dim, output_dim),
        "b3": bias(kb3, hidden_dim, output_dim),
    }


def _ref_f32(x, p):
    h = jnp.maximum(x @ p["w1"] + p["b1"], 0.0)
    h = jnp.maximum(h @ p["w2"] + p["b2"], 0.0)
    return h @ p["w3"] + p["b3"]


def _ref_bf16_path(x, p):
    # Mirrors the kernel's precision path: bf16 matmul operands, f32 accumulation,
    # f32 bias-add / ReLU.
    c = jnp.bfloat16
    h = jnp.dot(x.astype(c), p["w1"].astype(c), preferred_element_type=jnp.float32) + p["b1"]
    h = jnp.maximum(h, 0.0).astype(c)
    h = jnp.dot(h, p["w2"].astype(c), preferred_element_type=jnp.float32) + p["b2"]
    h = jnp.maximum(h, 0.0).astype(c)
    return jnp.dot(h, p["w3"].astype(c), preferred_element_type=jnp.float32) + p["b3"]


if __name__ == "__main__":
    key = jax.random.PRNGKey(0)
    k_param, k_x = jax.random.split(key)

    batch = 64           # small replay-style batch
    input_dim = 16       # small state vector
    output_dim = 4       # number of discrete actions
    hidden_dim = 128

    params = init_params(k_param, input_dim, output_dim, hidden_dim)
    prepared = prepare_params(params)   # one-time cast, hoisted out of the forward path
    x = jax.random.normal(k_x, (batch, input_dim), dtype=jnp.float32)

    out = dqn_forward(x, prepared)
    out = jax.block_until_ready(out)
    assert out.shape == (batch, output_dim)

    # Tight check against a reference that follows the same bf16 precision path.
    ref_b = _ref_bf16_path(x, params)
    assert jnp.allclose(out, ref_b, atol=2e-3, rtol=2e-3), \
        float(jnp.max(jnp.abs(out - ref_b)))

    # Loose check against the full-f32 PyTorch-equivalent math (bf16 operand rounding).
    ref32 = _ref_f32(x, params)
    assert jnp.allclose(out, ref32, atol=5e-2, rtol=5e-2), \
        float(jnp.max(jnp.abs(out - ref32)))

    print("KERNEL_OK")
</pallas_src>

<mosaic_0001>
module attributes {stable_mosaic.version = 11 : i64} {
  func.func @_dqn_mlp_kernel(%arg0: i32, %arg1: memref<64x16xf32, #tpu.memory_space<vmem>>, %arg2: memref<16x128xbf16, #tpu.memory_space<vmem>>, %arg3: memref<1x128xf32, #tpu.memory_space<vmem>>, %arg4: memref<128x128xbf16, #tpu.memory_space<vmem>>, %arg5: memref<1x128xf32, #tpu.memory_space<vmem>>, %arg6: memref<128x4xbf16, #tpu.memory_space<vmem>>, %arg7: memref<1x4xf32, #tpu.memory_space<vmem>>, %arg8: memref<64x4xf32, #tpu.memory_space<vmem>>) attributes {dimension_semantics = [#tpu.dimension_semantics<parallel>], iteration_bounds = array<i64: 1>, scalar_prefetch = 0 : i64, scratch_operands = 0 : i64, tpu.core_type = #tpu.core_type<tc>, window_params = [{transform_indices = @transform_0, window_bounds = array<i64: 64, 16>}, {pipeline_mode = #tpu.pipeline_mode<synchronous>, transform_indices = @transform_1, window_bounds = array<i64: 16, 128>}, {pipeline_mode = #tpu.pipeline_mode<synchronous>, transform_indices = @transform_2, window_bounds = array<i64: 1, 128>}, {pipeline_mode = #tpu.pipeline_mode<synchronous>, transform_indices = @transform_3, window_bounds = array<i64: 128, 128>}, {pipeline_mode = #tpu.pipeline_mode<synchronous>, transform_indices = @transform_4, window_bounds = array<i64: 1, 128>}, {pipeline_mode = #tpu.pipeline_mode<synchronous>, transform_indices = @transform_5, window_bounds = array<i64: 128, 4>}, {pipeline_mode = #tpu.pipeline_mode<synchronous>, transform_indices = @transform_6, window_bounds = array<i64: 1, 4>}, {transform_indices = @transform_7, window_bounds = array<i64: 64, 4>}]} {
    %c0 = arith.constant 0 : index
    %c0_0 = arith.constant 0 : index
    %0 = vector.load %arg1[%c0, %c0_0] : memref<64x16xf32, #tpu.memory_space<vmem>>, vector<64x16xf32>
    %1 = arith.truncf %0 : vector<64x16xf32> to vector<64x16xbf16>
    %c0_1 = arith.constant 0 : index
    %c0_2 = arith.constant 0 : index
    %2 = vector.load %arg2[%c0_1, %c0_2] : memref<16x128xbf16, #tpu.memory_space<vmem>>, vector<16x128xbf16>
    %cst = arith.constant dense<0.000000e+00> : vector<64x128xf32>
    %3 = tpu.matmul %1, %2, %cst {dimension_numbers = #tpu.dot_dimension_numbers<[1], [0], [0], [1], [0, 0, 1, 1], [], []>} : vector<64x16xbf16>, vector<16x128xbf16>, vector<64x128xf32> -> vector<64x128xf32>
    %c0_3 = arith.constant 0 : index
    %c0_4 = arith.constant 0 : index
    %4 = vector.load %arg3[%c0_3, %c0_4] : memref<1x128xf32, #tpu.memory_space<vmem>>, vector<1x128xf32>
    %5 = vector.broadcast %4 : vector<1x128xf32> to vector<64x128xf32>
    %6 = arith.addf %3, %5 : vector<64x128xf32>
    %cst_5 = arith.constant 0.000000e+00 : f32
    %7 = vector.broadcast %cst_5 : f32 to vector<64x128xf32>
    %8 = arith.maximumf %6, %7 : vector<64x128xf32>
    %9 = arith.truncf %8 : vector<64x128xf32> to vector<64x128xbf16>
    %c0_6 = arith.constant 0 : index
    %c0_7 = arith.constant 0 : index
    %10 = vector.load %arg4[%c0_6, %c0_7] : memref<128x128xbf16, #tpu.memory_space<vmem>>, vector<128x128xbf16>
    %cst_8 = arith.constant dense<0.000000e+00> : vector<64x128xf32>
    %11 = tpu.matmul %9, %10, %cst_8 {dimension_numbers = #tpu.dot_dimension_numbers<[1], [0], [0], [1], [0, 0, 1, 1], [], []>} : vector<64x128xbf16>, vector<128x128xbf16>, vector<64x128xf32> -> vector<64x128xf32>
    %c0_9 = arith.constant 0 : index
    %c0_10 = arith.constant 0 : index
    %12 = vector.load %arg5[%c0_9, %c0_10] : memref<1x128xf32, #tpu.memory_space<vmem>>, vector<1x128xf32>
    %13 = vector.broadcast %12 : vector<1x128xf32> to vector<64x128xf32>
    %14 = arith.addf %11, %13 : vector<64x128xf32>
    %cst_11 = arith.constant 0.000000e+00 : f32
    %15 = vector.broadcast %cst_11 : f32 to vector<64x128xf32>
    %16 = arith.maximumf %14, %15 : vector<64x128xf32>
    %17 = arith.truncf %16 : vector<64x128xf32> to vector<64x128xbf16>
    %c0_12 = arith.constant 0 : index
    %c0_13 = arith.constant 0 : index
    %18 = vector.load %arg6[%c0_12, %c0_13] : memref<128x4xbf16, #tpu.memory_space<vmem>>, vector<128x4xbf16>
    %cst_14 = arith.constant dense<0.000000e+00> : vector<64x4xf32>
    %19 = tpu.matmul %17, %18, %cst_14 {dimension_numbers = #tpu.dot_dimension_numbers<[1], [0], [0], [1], [0, 0, 1, 1], [], []>} : vector<64x128xbf16>, vector<128x4xbf16>, vector<64x4xf32> -> vector<64x4xf32>
    %c0_15 = arith.constant 0 : index
    %c0_16 = arith.constant 0 : index
    %20 = vector.load %arg7[%c0_15, %c0_16] : memref<1x4xf32, #tpu.memory_space<vmem>>, vector<1x4xf32>
    %21 = vector.broadcast %20 : vector<1x4xf32> to vector<64x4xf32>
    %22 = arith.addf %19, %21 : vector<64x4xf32>
    %c0_17 = arith.constant 0 : index
    %c0_18 = arith.constant 0 : index
    %23 = vector.load %arg8[%c0_17, %c0_18] : memref<64x4xf32, #tpu.memory_space<vmem>>, vector<64x4xf32>
    tpu.vector_store %arg8[%c0_17, %c0_18], %22 {strides = array<i32>} : memref<64x4xf32, #tpu.memory_space<vmem>>, vector<64x4xf32>,
    return
  }
  func.func @transform_0(%arg0: i32) -> (i32, i32) {
    %c0_i32 = arith.constant 0 : i32
    %c0_i32_0 = arith.constant 0 : i32
    return %arg0, %c0_i32 : i32, i32
  }
  func.func @transform_1(%arg0: i32) -> (i32, i32) {
    %c0_i32 = arith.constant 0 : i32
    %c0_i32_0 = arith.constant 0 : i32
    %c0_i32_1 = arith.constant 0 : i32
    return %c0_i32, %c0_i32_0 : i32, i32
  }
  func.func @transform_2(%arg0: i32) -> (i32, i32) {
    %c0_i32 = arith.constant 0 : i32
    %c0_i32_0 = arith.constant 0 : i32
    %c0_i32_1 = arith.constant 0 : i32
    return %c0_i32, %c0_i32_0 : i32, i32
  }
  func.func @transform_3(%arg0: i32) -> (i32, i32) {
    %c0_i32 = arith.constant 0 : i32
    %c0_i32_0 = arith.constant 0 : i32
    %c0_i32_1 = arith.constant 0 : i32
    return %c0_i32, %c0_i32_0 : i32, i32
  }
  func.func @transform_4(%arg0: i32) -> (i32, i32) {
    %c0_i32 = arith.constant 0 : i32
    %c0_i32_0 = arith.constant 0 : i32
    %c0_i32_1 = arith.constant 0 : i32
    return %c0_i32, %c0_i32_0 : i32, i32
  }
  func.func @transform_5(%arg0: i32) -> (i32, i32) {
    %c0_i32 = arith.constant 0 : i32
    %c0_i32_0 = arith.constant 0 : i32
    %c0_i32_1 = arith.constant 0 : i32
    return %c0_i32, %c0_i32_0 : i32, i32
  }
  func.func @transform_6(%arg0: i32) -> (i32, i32) {
    %c0_i32 = arith.constant 0 : i32
    %c0_i32_0 = arith.constant 0 : i32
    %c0_i32_1 = arith.constant 0 : i32
    return %c0_i32, %c0_i32_0 : i32, i32
  }
  func.func @transform_7(%arg0: i32) -> (i32, i32) {
    %c0_i32 = arith.constant 0 : i32
    %c0_i32_0 = arith.constant 0 : i32
    return %arg0, %c0_i32 : i32, i32
  }
}

</mosaic_0001>

<llo_original>
// kernel: dqn_forward.1
$region0: #{dqn_forward.1}
  #allocation0 [shape = 'u32[]', space=smem, size = 0x4, offset = 0x4, fixed_abs, tag = 'smem constant byte address 0x4 - core index']
  #allocation1 [shape = 'u32[72,128]{1,0:T(1,128)}', space=vmem, size = 0x9000, scoped, tag = 'internal scratch']
  %s0 = inlined_call_operand.vmem [shape: f32[64,16], index: 0, kind: input, shape index: {}]
  %s1 = inlined_call_operand.vmem [shape: bf16[16,128], index: 1, kind: input, shape index: {}]
  %s2 = inlined_call_operand.vmem [shape: f32[1,128], index: 2, kind: input, shape index: {}]
  %s3 = inlined_call_operand.vmem [shape: bf16[128,128], index: 3, kind: input, shape index: {}]
  %s4 = inlined_call_operand.vmem [shape: f32[1,128], index: 4, kind: input, shape index: {}]
  %s5 = inlined_call_operand.vmem [shape: bf16[128,4], index: 5, kind: input, shape index: {}]
  %s6 = inlined_call_operand.vmem [shape: f32[1,4], index: 6, kind: input, shape index: {}]
  %s7 = inlined_call_operand.vmem [shape: f32[64,4], index: 7, kind: output, shape index: {}]
  %s8 = sld [smem:[#allocation0]]
  $region38: #{dqn_forward.1} parent=0
    _
  %s10 = ssub.s32 1, %s8
  %s11 = scalar_select 0, %s10, %s8
  // Predicated region
  $region2: #{dqn_forward.1} parent=0 // pred_check
    _
  $region3: #{dqn_forward.1} parent=0 // pred_check_branch
    %13 = sbr.rel (0) target = $region5
  $region4: #{dqn_forward.1} parent=0 // pred_region
    _
  $region5: #{dqn_forward.1} parent=0 // pred_fallthru
    _
  // Predicated region
  $region6: #{dqn_forward.1} parent=0 // pred_check
    _
  $region7: #{dqn_forward.1} parent=0 // pred_check_branch
    %15 = sbr.rel (0) target = $region9
  $region8: #{dqn_forward.1} parent=0 // pred_region
    _
  $region9: #{dqn_forward.1} parent=0 // pred_fallthru
    _
  // Predicated region
  $region10: #{dqn_forward.1} parent=0 // pred_check
    _
  $region11: #{dqn_forward.1} parent=0 // pred_check_branch
    %17 = sbr.rel (0) target = $region13
  $region12: #{dqn_forward.1} parent=0 // pred_region
    _
  $region13: #{dqn_forward.1} parent=0 // pred_fallthru
    _
  // Predicated region
  $region14: #{dqn_forward.1} parent=0 // pred_check
    _
  $region15: #{dqn_forward.1} parent=0 // pred_check_branch
    %19 = sbr.rel (0) target = $region17
  $region16: #{dqn_forward.1} parent=0 // pred_region
    _
  $region17: #{dqn_forward.1} parent=0 // pred_fallthru
    _
  // Predicated region
  $region18: #{dqn_forward.1} parent=0 // pred_check
    _
  $region19: #{dqn_forward.1} parent=0 // pred_check_branch
    %21 = sbr.rel (0) target = $region21
  $region20: #{dqn_forward.1} parent=0 // pred_region
    _
  $region21: #{dqn_forward.1} parent=0 // pred_fallthru
    _
  // Predicated region
  $region22: #{dqn_forward.1} parent=0 // pred_check
    _
  $region23: #{dqn_forward.1} parent=0 // pred_check_branch
    %23 = sbr.rel (0) target = $region25
  $region24: #{dqn_forward.1} parent=0 // pred_region
    _
  $region25: #{dqn_forward.1} parent=0 // pred_fallthru
    _
  // Predicated region
  $region26: #{dqn_forward.1} parent=0 // pred_check
    _
  $region27: #{dqn_forward.1} parent=0 // pred_check_branch
    %25 = sbr.rel (0) target = $region29
  $region28: #{dqn_forward.1} parent=0 // pred_region
    _
  $region29: #{dqn_forward.1} parent=0 // pred_fallthru
    _
  %v27 = vld [vmem:[%s0] sm:$0xff]
  %v28 = vld [vmem:[%s0 + $0x8] sm:$0xff]
  %v29 = vld [vmem:[%s0 + $0x10] sm:$0xff]
  %v30 = vld [vmem:[%s0 + $0x18] sm:$0xff]
  %v31 = vld [vmem:[%s0 + $0x20] sm:$0xff]
  %v32 = vld [vmem:[%s0 + $0x28] sm:$0xff]
  %v33 = vld [vmem:[%s0 + $0x30] sm:$0xff]
  %v34 = vld [vmem:[%s0 + $0x38] sm:$0xff]
  %v35 = vpack.c.bf16 %v28, %v27
  %v36 = vpack.c.bf16 %v30, %v29
  %v37 = vpack.c.bf16 %v32, %v31
  %v38 = vpack.c.bf16 %v34, %v33
  %v39 = vld [vmem:[%s1] sm:$0xf]
  %v40 = vld [vmem:[%s1 + $0x4] sm:$0xf]
  %v41 = vld [vmem:[%s2] sm:$0x1]
  %v43 = vperm.slane %v41, 0
  %v47 = vunpack.c.l.b16 %v39
  %v48 = vunpack.c.l.b16 %v40
  %v49 = vpack.c.b16 %v48, %v47
  %vm51 = vcmask 130048
  %v53 = vsel %vm51, %v35, 0
  %v56 = vsel %vm51, %v36, 0
  %v59 = vsel %vm51, %v37, 0
  %v62 = vsel %vm51, %v38, 0
  %64 = vmatpush.bf16.msra.mxu0 0
  %65 = vmatpush.bf16.msra.mxu0 0
  %66 = vmatpush.bf16.msra.mxu0 0
  %67 = vmatpush.bf16.msra.mxu0 0
  %68 = vmatpush.bf16.msra.mxu0 0
  %69 = vmatpush.bf16.msra.mxu0 0
  %70 = vmatpush.bf16.msra.mxu0 0
  %71 = vmatpush.bf16.msra.mxu0 %v49
  %72 = vmatmul.bf16.gmra.mxu0 %v53
  %v73 = vpop.f32.mrf.mxu0
  %v74 = vadd.f32 %v43, %v73
  %v75 = vpop.f32.mrf.mxu0
  %v76 = vadd.f32 %v43, %v75
  %77 = vmatmul.bf16.gmra.mxu0 %v56
  %v78 = vpop.f32.mrf.mxu0
  %v79 = vadd.f32 %v43, %v78
  %v80 = vpop.f32.mrf.mxu0
  %v81 = vadd.f32 %v43, %v80
  %82 = vmatmul.bf16.gmra.mxu0 %v59
  %v83 = vpop.f32.mrf.mxu0
  %v84 = vadd.f32 %v43, %v83
  %v85 = vpop.f32.mrf.mxu0
  %v86 = vadd.f32 %v43, %v85
  %87 = vmatmul.bf16.gmra.mxu0 %v62
  %v88 = vpop.f32.mrf.mxu0
  %v89 = vadd.f32 %v43, %v88
  %v90 = vpop.f32.mrf.mxu0
  %v91 = vadd.f32 %v43, %v90
  %92 = vdwg.mxu0
  %v93 = vmax.f32 %v74, 0.0
  %v94 = vmax.f32 %v76, 0.0
  %v95 = vmax.f32 %v79, 0.0
  %v96 = vmax.f32 %v81, 0.0
  %v97 = vmax.f32 %v84, 0.0
  %v98 = vmax.f32 %v86, 0.0
  %v99 = vmax.f32 %v89, 0.0
  %v100 = vmax.f32 %v91, 0.0
  %v101 = vpack.c.bf16 %v94, %v93
  %v102 = vpack.c.bf16 %v96, %v95
  %v103 = vpack.c.bf16 %v98, %v97
  %v104 = vpack.c.bf16 %v100, %v99
  %v105 = vld [vmem:[%s3] sm:$0xf]
  %v106 = vld [vmem:[%s3 + $0x4] sm:$0xf]
  %v107 = vld [vmem:[%s3 + $0x8] sm:$0xf]
  %v108 = vld [vmem:[%s3 + $0xc] sm:$0xf]
  %v109 = vld [vmem:[%s3 + $0x10] sm:$0xf]
  %v110 = vld [vmem:[%s3 + $0x14] sm:$0xf]
  %v111 = vld [vmem:[%s3 + $0x18] sm:$0xf]
  %v112 = vld [vmem:[%s3 + $0x1c] sm:$0xf]
  %v113 = vld [vmem:[%s3 + $0x20] sm:$0xf]
  %v114 = vld [vmem:[%s3 + $0x24] sm:$0xf]
  %v115 = vld [vmem:[%s3 + $0x28] sm:$0xf]
  %v116 = vld [vmem:[%s3 + $0x2c] sm:$0xf]
  %v117 = vld [vmem:[%s3 + $0x30] sm:$0xf]
  %v118 = vld [vmem:[%s3 + $0x34] sm:$0xf]
  %v119 = vld [vmem:[%s3 + $0x38] sm:$0xf]
  %v120 = vld [vmem:[%s3 + $0x3c] sm:$0xf]
  %v121 = vld [vmem:[%s4] sm:$0x1]
  %v123 = vperm.slane %v121, 0
  %v141 = vunpack.c.l.b16 %v105
  %v142 = vunpack.c.l.b16 %v106
  %v143 = vunpack.c.l.b16 %v107
  %v144 = vunpack.c.l.b16 %v108
  %v145 = vunpack.c.l.b16 %v109
  %v146 = vunpack.c.l.b16 %v110
  %v147 = vunpack.c.l.b16 %v111
  %v148 = vunpack.c.l.b16 %v112
  %v149 = vunpack.c.l.b16 %v113
  %v150 = vunpack.c.l.b16 %v114
  %v151 = vunpack.c.l.b16 %v115
  %v152 = vunpack.c.l.b16 %v116
  %v153 = vunpack.c.l.b16 %v117
  %v154 = vunpack.c.l.b16 %v118
  %v155 = vunpack.c.l.b16 %v119
  %v156 = vunpack.c.l.b16 %v120
  %v157 = vpack.c.b16 %v142, %v141
  %v158 = vpack.c.b16 %v144, %v143
  %v159 = vpack.c.b16 %v146, %v145
  %v160 = vpack.c.b16 %v148, %v147
  %v161 = vpack.c.b16 %v150, %v149
  %v162 = vpack.c.b16 %v152, %v151
  %v163 = vpack.c.b16 %v154, %v153
  %v164 = vpack.c.b16 %v156, %v155
  %173 = vmatpush.bf16.msra.mxu0 %v164
  %174 = vmatpush.bf16.msra.mxu0 %v163
  %175 = vmatpush.bf16.msra.mxu0 %v162
  %176 = vmatpush.bf16.msra.mxu0 %v161
  %177 = vmatpush.bf16.msra.mxu0 %v160
  %178 = vmatpush.bf16.msra.mxu0 %v159
  %179 = vmatpush.bf16.msra.mxu0 %v158
  %180 = vmatpush.bf16.msra.mxu0 %v157
  %181 = vmatmul.bf16.gmra.mxu0 %v101
  %v182 = vpop.f32.mrf.mxu0
  %v183 = vadd.f32 %v123, %v182
  %v184 = vpop.f32.mrf.mxu0
  %v185 = vadd.f32 %v123, %v184
  %186 = vmatmul.bf16.gmra.mxu0 %v102
  %v187 = vpop.f32.mrf.mxu0
  %v188 = vadd.f32 %v123, %v187
  %v189 = vpop.f32.mrf.mxu0
  %v190 = vadd.f32 %v123, %v189
  %191 = vmatmul.bf16.gmra.mxu0 %v103
  %v192 = vpop.f32.mrf.mxu0
  %v193 = vadd.f32 %v123, %v192
  %v194 = vpop.f32.mrf.mxu0
  %v195 = vadd.f32 %v123, %v194
  %196 = vmatmul.bf16.gmra.mxu0 %v104
  %v197 = vpop.f32.mrf.mxu0
  %v198 = vadd.f32 %v123, %v197
  %v199 = vpop.f32.mrf.mxu0
  %v200 = vadd.f32 %v123, %v199
  %201 = vdwg.mxu0
  %v202 = vmax.f32 %v183, 0.0
  %v203 = vmax.f32 %v185, 0.0
  %v204 = vmax.f32 %v188, 0.0
  %v205 = vmax.f32 %v190, 0.0
  %v206 = vmax.f32 %v193, 0.0
  %v207 = vmax.f32 %v195, 0.0
  %v208 = vmax.f32 %v198, 0.0
  %v209 = vmax.f32 %v200, 0.0
  %v210 = vpack.c.bf16 %v203, %v202
  %v211 = vpack.c.bf16 %v205, %v204
  %v212 = vpack.c.bf16 %v207, %v206
  %v213 = vpack.c.bf16 %v209, %v208
  %v214 = vld [vmem:[%s5] sm:$0xf]
  %v215 = vld [vmem:[%s5 + $0x4] sm:$0xf]
  %v216 = vld [vmem:[%s5 + $0x8] sm:$0xf]
  %v217 = vld [vmem:[%s5 + $0xc] sm:$0xf]
  %v218 = vld [vmem:[%s5 + $0x10] sm:$0xf]
  %v219 = vld [vmem:[%s5 + $0x14] sm:$0xf]
  %v220 = vld [vmem:[%s5 + $0x18] sm:$0xf]
  %v221 = vld [vmem:[%s5 + $0x1c] sm:$0xf]
  %v222 = vld [vmem:[%s5 + $0x20] sm:$0xf]
  %v223 = vld [vmem:[%s5 + $0x24] sm:$0xf]
  %v224 = vld [vmem:[%s5 + $0x28] sm:$0xf]
  %v225 = vld [vmem:[%s5 + $0x2c] sm:$0xf]
  %v226 = vld [vmem:[%s5 + $0x30] sm:$0xf]
  %v227 = vld [vmem:[%s5 + $0x34] sm:$0xf]
  %v228 = vld [vmem:[%s5 + $0x38] sm:$0xf]
  %v229 = vld [vmem:[%s5 + $0x3c] sm:$0xf]
  %v230 = vld [vmem:[%s6] sm:$0x1]
  %v232 = vperm.slane %v230, 0
  %v250 = vunpack.c.l.b16 %v214
  %v251 = vunpack.c.l.b16 %v215
  %v252 = vunpack.c.l.b16 %v216
  %v253 = vunpack.c.l.b16 %v217
  %v254 = vunpack.c.l.b16 %v218
  %v255 = vunpack.c.l.b16 %v219
  %v256 = vunpack.c.l.b16 %v220
  %v257 = vunpack.c.l.b16 %v221
  %v258 = vunpack.c.l.b16 %v222
  %v259 = vunpack.c.l.b16 %v223
  %v260 = vunpack.c.l.b16 %v224
  %v261 = vunpack.c.l.b16 %v225
  %v262 = vunpack.c.l.b16 %v226
  %v263 = vunpack.c.l.b16 %v227
  %v264 = vunpack.c.l.b16 %v228
  %v265 = vunpack.c.l.b16 %v229
  %v266 = vpack.c.b16 %v251, %v250
  %v267 = vpack.c.b16 %v253, %v252
  %v268 = vpack.c.b16 %v255, %v254
  %v269 = vpack.c.b16 %v257, %v256
  %v270 = vpack.c.b16 %v259, %v258
  %v271 = vpack.c.b16 %v261, %v260
  %v272 = vpack.c.b16 %v263, %v262
  %v273 = vpack.c.b16 %v265, %v264
  %282 = vmatpush.bf16.msra.mxu0 %v273
  %283 = vmatpush.bf16.msra.mxu0 %v272
  %284 = vmatpush.bf16.msra.mxu0 %v271
  %285 = vmatpush.bf16.msra.mxu0 %v270
  %286 = vmatpush.bf16.msra.mxu0 %v269
  %287 = vmatpush.bf16.msra.mxu0 %v268
  %288 = vmatpush.bf16.msra.mxu0 %v267
  %289 = vmatpush.bf16.msra.mxu0 %v266
  %290 = vmatmul.bf16.gmra.mxu0 %v210
  %v291 = vpop.f32.mrf.mxu0
  %v292 = vadd.f32 %v232, %v291
  %v293 = vpop.f32.mrf.mxu0
  %v294 = vadd.f32 %v232, %v293
  %295 = vmatmul.bf16.gmra.mxu0 %v211
  %v296 = vpop.f32.mrf.mxu0
  %v297 = vadd.f32 %v232, %v296
  %v298 = vpop.f32.mrf.mxu0
  %v299 = vadd.f32 %v232, %v298
  %300 = vmatmul.bf16.gmra.mxu0 %v212
  %v301 = vpop.f32.mrf.mxu0
  %v302 = vadd.f32 %v232, %v301
  %v303 = vpop.f32.mrf.mxu0
  %v304 = vadd.f32 %v232, %v303
  %305 = vmatmul.bf16.gmra.mxu0 %v213
  %v306 = vpop.f32.mrf.mxu0
  %v307 = vadd.f32 %v232, %v306
  %v308 = vpop.f32.mrf.mxu0
  %v309 = vadd.f32 %v232, %v308
  %310 = vdwg.mxu0
  %vm311 = vcmask 31744
  %312 = vst.msk [vmem:[%s7] sm:$0xff] %vm311, %v292
  %313 = vst.msk [vmem:[%s7 + $0x8] sm:$0xff] %vm311, %v294
  %314 = vst.msk [vmem:[%s7 + $0x10] sm:$0xff] %vm311, %v297
  %315 = vst.msk [vmem:[%s7 + $0x18] sm:$0xff] %vm311, %v299
  %316 = vst.msk [vmem:[%s7 + $0x20] sm:$0xff] %vm311, %v302
  %317 = vst.msk [vmem:[%s7 + $0x28] sm:$0xff] %vm311, %v304
  %318 = vst.msk [vmem:[%s7 + $0x30] sm:$0xff] %vm311, %v307
  %319 = vst.msk [vmem:[%s7 + $0x38] sm:$0xff] %vm311, %v309
  // Predicated region
  $region30: #{dqn_forward.1} parent=0 // pred_check
    _
  $region31: #{dqn_forward.1} parent=0 // pred_check_branch
    %321 = sbr.rel (0) target = $region33
  $region32: #{dqn_forward.1} parent=0 // pred_region
    _
  $region33: #{dqn_forward.1} parent=0 // pred_fallthru
    _
  // Predicated region
  $region34: #{dqn_forward.1} parent=0 // pred_check
    _
  $region35: #{dqn_forward.1} parent=0 // pred_check_branch
    %323 = sbr.rel (0) target = $region37
  $region36: #{dqn_forward.1} parent=0 // pred_region
    _
  $region37: #{dqn_forward.1} parent=0 // pred_fallthru
    _

</llo_original>
